<compile_context>
chip_gen: v6e
topology: v6e:2x2x1
jax: 0.10.0
libtpu: 0.0.40
codegen_flags: <defaults>
</compile_context>

<pallas_src>
import jax
import jax.numpy as jnp
from jax.experimental import pallas as pl
from jax.experimental.pallas import tpu as pltpu

_NEG_LARGE = -1e30  # "minus infinity" for padded logit columns (no inf/NaN math)
_LANE = 128
_SUBLANE = 8


def _round_up(x, m):
    return ((x + m - 1) // m) * m


def policy_kernel(x_ref, w1_ref, b1_ref, w2_ref, b2_ref, o_ref):
    # fc1 (MXU, bf16 inputs, f32 accumulate) + bias + ReLU (VPU, f32)
    h = jnp.dot(x_ref[...], w1_ref[...], preferred_element_type=jnp.float32)
    h = jnp.maximum(h + b1_ref[...], 0.0)            # (TB, H) + (1, H) broadcast

    # fc2 -- output columns pre-padded to a multiple of 128 lanes.
    # Padded columns: w2 == 0, b2 == -1e30  ->  softmax prob exactly 0 there.
    logits = jnp.dot(h.astype(w2_ref.dtype), w2_ref[...],
                     preferred_element_type=jnp.float32)
    logits = logits + b2_ref[...]                    # (TB, Op) + (1, Op) broadcast

    # numerically stable softmax over the last dim (torch.nn.Softmax(dim=-1))
    m = jnp.max(logits, axis=-1, keepdims=True)
    e = jnp.exp(logits - m)
    denom = jnp.sum(e, axis=-1, keepdims=True)
    # exact EUP reciprocal: rows sum to 1 at f32 precision
    o_ref[...] = (e * pl.reciprocal(denom)).astype(o_ref.dtype)


def prepare_params(w1, b1, w2, b2, *, param_dtype=jnp.bfloat16):
    """One-time (hoisted) padding + dtype cast of the weights.

    w1: (in, hidden), b1: (1, hidden), w2: (hidden, out), b2: (1, out).
    Returns the tuple consumed by policy_network_forward.
    """
    out_size = w2.shape[1]
    padded_out = _round_up(max(out_size, _LANE), _LANE)
    pad_cols = padded_out - out_size
    w2p = jnp.pad(w2, ((0, 0), (0, pad_cols))).astype(param_dtype)         # zeros
    b2p = jnp.pad(b2, ((0, 0), (0, pad_cols)),
                  constant_values=_NEG_LARGE).astype(jnp.float32)          # -inf-ish
    return (w1.astype(param_dtype), b1.astype(jnp.float32), w2p, b2p, out_size)


def policy_network_forward(x, params, *, max_batch_tile=512, out_dtype=jnp.float32):
    """x: (B, in). params: output of prepare_params. Returns (B, out) probabilities."""
    w1, b1, w2p, b2p, out_size = params
    B, in_size = x.shape
    hidden = w1.shape[1]
    padded_out = w2p.shape[1]

    # --- adaptive batch tile: one grid step unless the batch is genuinely large.
    tb = min(_round_up(B, _SUBLANE), _round_up(max_batch_tile, _SUBLANE))
    padded_b = _round_up(B, tb)
    grid = (padded_b // tb,)
    # When grid > 1 the batch axis is "parallel" and shards across v7x's two
    # TensorCores; for grid == (1,) there is nothing to shard (such small
    # batches are launch/DMA-overhead bound anyway).

    xp = x if padded_b == B else jnp.pad(x, ((0, padded_b - B), (0, 0)))
    xp = xp.astype(w1.dtype)   # bf16 on the wire -> half the per-step x DMA bytes

    itemsize = jnp.dtype(w1.dtype).itemsize
    cost = pl.CostEstimate(
        flops=2 * padded_b * (in_size * hidden + hidden * padded_out),
        transcendentals=padded_b * (padded_out + 1),        # exp + reciprocal
        bytes_accessed=(padded_b * in_size * itemsize
                        + in_size * hidden * itemsize
                        + hidden * padded_out * itemsize
                        + (hidden + padded_out) * 4
                        + padded_b * padded_out * jnp.dtype(out_dtype).itemsize),
    )

    out = pl.pallas_call(
        policy_kernel,
        out_shape=jax.ShapeDtypeStruct((padded_b, padded_out), out_dtype),
        grid=grid,
        in_specs=[
            pl.BlockSpec((tb, in_size), lambda i: (i, 0)),        # x tile moves with i
            pl.BlockSpec((in_size, hidden), lambda i: (0, 0)),    # weights stay resident
            pl.BlockSpec((1, hidden), lambda i: (0, 0)),
            pl.BlockSpec((hidden, padded_out), lambda i: (0, 0)),
            pl.BlockSpec((1, padded_out), lambda i: (0, 0)),
        ],
        out_specs=pl.BlockSpec((tb, padded_out), lambda i: (i, 0)),
        compiler_params=pltpu.CompilerParams(
            dimension_semantics=("parallel",),
        ),
        cost_estimate=cost,
    )(xp, w1, b1, w2p, b2p)

    # TODO(synk): fold this slice into the consumer to avoid an extra HBM pass.
    return out[:B, :out_size]


def init_params(key, input_size, hidden_size, output_size):
    """Deterministic init mimicking nn.Linear's uniform(-1/sqrt(fan_in), 1/sqrt(fan_in))."""
    k1, k2, k3, k4 = jax.random.split(key, 4)
    bound1 = 1.0 / jnp.sqrt(input_size)
    bound2 = 1.0 / jnp.sqrt(hidden_size)
    w1 = jax.random.uniform(k1, (input_size, hidden_size), jnp.float32, -bound1, bound1)
    b1 = jax.random.uniform(k2, (1, hidden_size), jnp.float32, -bound1, bound1)
    w2 = jax.random.uniform(k3, (hidden_size, output_size), jnp.float32, -bound2, bound2)
    b2 = jax.random.uniform(k4, (1, output_size), jnp.float32, -bound2, bound2)
    return w1, b1, w2, b2


if __name__ == "__main__":
    key = jax.random.PRNGKey(0)
    kx, kp = jax.random.split(key)

    batch = 16
    input_size = 16
    hidden_size = 32
    output_size = 8

    x = jax.random.normal(kx, (batch, input_size), jnp.float32)
    w1, b1, w2, b2 = init_params(kp, input_size, hidden_size, output_size)
    params = prepare_params(w1, b1, w2, b2)          # pad + cast once, not per call

    probs = policy_network_forward(x, params)
    jax.block_until_ready(probs)

    # reference in plain JAX, reproducing the kernel's bf16-rounded MXU inputs
    bf = lambda a: a.astype(jnp.bfloat16).astype(jnp.float32)
    h_ref = jnp.maximum(bf(x) @ bf(w1) + b1, 0.0)
    logits_ref = bf(h_ref) @ bf(w2) + b2
    probs_ref = jax.nn.softmax(logits_ref, axis=-1)

    assert probs.shape == (batch, output_size)
    assert jnp.allclose(probs, probs_ref, atol=1e-4), "mismatch vs reference"
    assert jnp.allclose(jnp.sum(probs, axis=-1), 1.0, atol=1e-4), "rows must sum to 1"

    print("KERNEL_OK")
</pallas_src>

<mosaic_0001>
module attributes {stable_mosaic.version = 11 : i64} {
  func.func @policy_kernel(%arg0: i32, %arg1: memref<16x16xbf16, #tpu.memory_space<vmem>>, %arg2: memref<16x32xbf16, #tpu.memory_space<vmem>>, %arg3: memref<1x32xf32, #tpu.memory_space<vmem>>, %arg4: memref<32x128xbf16, #tpu.memory_space<vmem>>, %arg5: memref<1x128xf32, #tpu.memory_space<vmem>>, %arg6: memref<16x128xf32, #tpu.memory_space<vmem>>) attributes {dimension_semantics = [#tpu.dimension_semantics<parallel>], iteration_bounds = array<i64: 1>, scalar_prefetch = 0 : i64, scratch_operands = 0 : i64, tpu.core_type = #tpu.core_type<tc>, window_params = [{transform_indices = @transform_0, window_bounds = array<i64: 16, 16>}, {pipeline_mode = #tpu.pipeline_mode<synchronous>, transform_indices = @transform_1, window_bounds = array<i64: 16, 32>}, {pipeline_mode = #tpu.pipeline_mode<synchronous>, transform_indices = @transform_2, window_bounds = array<i64: 1, 32>}, {pipeline_mode = #tpu.pipeline_mode<synchronous>, transform_indices = @transform_3, window_bounds = array<i64: 32, 128>}, {pipeline_mode = #tpu.pipeline_mode<synchronous>, transform_indices = @transform_4, window_bounds = array<i64: 1, 128>}, {transform_indices = @transform_5, window_bounds = array<i64: 16, 128>}]} {
    %c0 = arith.constant 0 : index
    %c0_0 = arith.constant 0 : index
    %0 = vector.load %arg1[%c0, %c0_0] : memref<16x16xbf16, #tpu.memory_space<vmem>>, vector<16x16xbf16>
    %c0_1 = arith.constant 0 : index
    %c0_2 = arith.constant 0 : index
    %1 = vector.load %arg2[%c0_1, %c0_2] : memref<16x32xbf16, #tpu.memory_space<vmem>>, vector<16x32xbf16>
    %cst = arith.constant dense<0.000000e+00> : vector<16x32xf32>
    %2 = tpu.matmul %0, %1, %cst {dimension_numbers = #tpu.dot_dimension_numbers<[1], [0], [0], [1], [0, 0, 1, 1], [], []>} : vector<16x16xbf16>, vector<16x32xbf16>, vector<16x32xf32> -> vector<16x32xf32>
    %c0_3 = arith.constant 0 : index
    %c0_4 = arith.constant 0 : index
    %3 = vector.load %arg3[%c0_3, %c0_4] : memref<1x32xf32, #tpu.memory_space<vmem>>, vector<1x32xf32>
    %4 = vector.broadcast %3 : vector<1x32xf32> to vector<16x32xf32>
    %5 = arith.addf %2, %4 : vector<16x32xf32>
    %cst_5 = arith.constant 0.000000e+00 : f32
    %6 = vector.broadcast %cst_5 : f32 to vector<16x32xf32>
    %7 = arith.maximumf %5, %6 : vector<16x32xf32>
    %8 = arith.truncf %7 : vector<16x32xf32> to vector<16x32xbf16>
    %c0_6 = arith.constant 0 : index
    %c0_7 = arith.constant 0 : index
    %9 = vector.load %arg4[%c0_6, %c0_7] : memref<32x128xbf16, #tpu.memory_space<vmem>>, vector<32x128xbf16>
    %cst_8 = arith.constant dense<0.000000e+00> : vector<16x128xf32>
    %10 = tpu.matmul %8, %9, %cst_8 {dimension_numbers = #tpu.dot_dimension_numbers<[1], [0], [0], [1], [0, 0, 1, 1], [], []>} : vector<16x32xbf16>, vector<32x128xbf16>, vector<16x128xf32> -> vector<16x128xf32>
    %c0_9 = arith.constant 0 : index
    %c0_10 = arith.constant 0 : index
    %11 = vector.load %arg5[%c0_9, %c0_10] : memref<1x128xf32, #tpu.memory_space<vmem>>, vector<1x128xf32>
    %12 = vector.broadcast %11 : vector<1x128xf32> to vector<16x128xf32>
    %13 = arith.addf %10, %12 : vector<16x128xf32>
    %cst_11 = arith.constant dense<0xFF800000> : vector<16xf32>
    %14 = vector.multi_reduction <maximumf>, %13, %cst_11 [1] : vector<16x128xf32> to vector<16xf32>
    %15 = vector.shape_cast %14 : vector<16xf32> to vector<16x1xf32>
    %16 = vector.broadcast %15 : vector<16x1xf32> to vector<16x128xf32>
    %17 = arith.subf %13, %16 : vector<16x128xf32>
    %18 = math.exp %17 : vector<16x128xf32>
    %cst_12 = arith.constant dense<0.000000e+00> : vector<16xf32>
    %19 = vector.multi_reduction <add>, %18, %cst_12 [1] : vector<16x128xf32> to vector<16xf32>
    %20 = vector.shape_cast %19 : vector<16xf32> to vector<16x1xf32>
    %21 = tpu.reciprocal %20 : vector<16x1xf32> -> vector<16x1xf32>
    %22 = vector.broadcast %21 : vector<16x1xf32> to vector<16x128xf32>
    %23 = arith.mulf %18, %22 : vector<16x128xf32>
    %c0_13 = arith.constant 0 : index
    %c0_14 = arith.constant 0 : index
    %24 = vector.load %arg6[%c0_13, %c0_14] : memref<16x128xf32, #tpu.memory_space<vmem>>, vector<16x128xf32>
    tpu.vector_store %arg6[%c0_13, %c0_14], %23 {strides = array<i32>} : memref<16x128xf32, #tpu.memory_space<vmem>>, vector<16x128xf32>,
    return
  }
  func.func @transform_0(%arg0: i32) -> (i32, i32) {
    %c0_i32 = arith.constant 0 : i32
    %c0_i32_0 = arith.constant 0 : i32
    return %arg0, %c0_i32 : i32, i32
  }
  func.func @transform_1(%arg0: i32) -> (i32, i32) {
    %c0_i32 = arith.constant 0 : i32
    %c0_i32_0 = arith.constant 0 : i32
    %c0_i32_1 = arith.constant 0 : i32
    return %c0_i32, %c0_i32_0 : i32, i32
  }
  func.func @transform_2(%arg0: i32) -> (i32, i32) {
    %c0_i32 = arith.constant 0 : i32
    %c0_i32_0 = arith.constant 0 : i32
    %c0_i32_1 = arith.constant 0 : i32
    return %c0_i32, %c0_i32_0 : i32, i32
  }
  func.func @transform_3(%arg0: i32) -> (i32, i32) {
    %c0_i32 = arith.constant 0 : i32
    %c0_i32_0 = arith.constant 0 : i32
    %c0_i32_1 = arith.constant 0 : i32
    return %c0_i32, %c0_i32_0 : i32, i32
  }
  func.func @transform_4(%arg0: i32) -> (i32, i32) {
    %c0_i32 = arith.constant 0 : i32
    %c0_i32_0 = arith.constant 0 : i32
    %c0_i32_1 = arith.constant 0 : i32
    return %c0_i32, %c0_i32_0 : i32, i32
  }
  func.func @transform_5(%arg0: i32) -> (i32, i32) {
    %c0_i32 = arith.constant 0 : i32
    %c0_i32_0 = arith.constant 0 : i32
    return %arg0, %c0_i32 : i32, i32
  }
}

</mosaic_0001>

<llo_original>
// kernel: tpu_custom_call.1
$region0: #{tpu_custom_call.1}
  #allocation0 [shape = 'u32[]', space=smem, size = 0x4, offset = 0x4, fixed_abs, tag = 'smem constant byte address 0x4 - core index']
  #allocation1 [shape = 'u32[144,128]{1,0:T(1,128)}', space=vmem, size = 0x12000, scoped, tag = 'internal scratch']
  %s0 = inlined_call_operand.hbm [shape: bf16[16,16], index: 0, kind: input, shape index: {}]
  %s1 = inlined_call_operand.hbm [shape: bf16[16,32], index: 1, kind: input, shape index: {}]
  %s2 = inlined_call_operand.vmem [shape: f32[1,32], index: 2, kind: input, shape index: {}]
  %s3 = inlined_call_operand.hbm [shape: bf16[32,128], index: 3, kind: input, shape index: {}]
  %s4 = inlined_call_operand.vmem [shape: f32[1,128], index: 4, kind: input, shape index: {}]
  %s5 = inlined_call_operand.hbm [shape: f32[16,128], index: 5, kind: output, shape index: {}]
  %s6 = sld [smem:[#allocation0]]
  $region42: #{tpu_custom_call.1} parent=0
    _
  %s8 = ssub.s32 1, %s6
  %s9 = scalar_select 0, %s8, %s6
  $region1: #{tpu_custom_call.1} parent=0
    #allocation2 [shape = 'u8[4096]{0}', space=vmem, size = 0x1000, scoped, tag = 'input window, operand 0, single buffered']
    #allocation3 [shape = 's32[1]{0}', space=sflag, size = 0x4, scoped, tag = 'scoped memory for tpu_custom_call.1']
    #allocation4 [shape = 's32[1]{0}', space=sflag, size = 0x4, scoped, tag = 'scoped memory for tpu_custom_call.1']
    #allocation5 [shape = 'u8[4096]{0}', space=vmem, size = 0x1000, scoped, tag = 'input window, operand 1, single buffered']
    #allocation6 [shape = 's32[1]{0}', space=sflag, size = 0x4, scoped, tag = 'scoped memory for tpu_custom_call.1']
    #allocation7 [shape = 'u8[8192]{0}', space=vmem, size = 0x2000, scoped, tag = 'input window, operand 3, single buffered']
    #allocation8 [shape = 'u8[8192]{0}', space=vmem, size = 0x2000, scoped, tag = 'output window, operand 0, single buffered']
    %10 = vsyncpa [#allocation3], 0
    %11 = vsyncpa [#allocation6], 0
    %12 = vsyncpa [#allocation4], 0
    // Predicated region
    $region2: #{tpu_custom_call.1} parent=1 // pred_check
      _
    $region3: #{tpu_custom_call.1} parent=1 // pred_check_branch
      %14 = sbr.rel (0) target = $region5
    $region4: #{tpu_custom_call.1} parent=1 // pred_region
      %s16 = ssub.s32 128, 128
      %17 = vsyncadd [#allocation3], %s16
      %s18 = sshll.u32 [#allocation2], 4
      %s19 = int_to_ptr.vmem [resolvable:$true] %s18
      %24 = dma.hbm_to_vmem [thread:$0]  %s0, 128, %s19, [#allocation3], 64, 64, 4
    $region5: #{tpu_custom_call.1} parent=1 // pred_fallthru
      _
    // Predicated region
    $region6: #{tpu_custom_call.1} parent=1 // pred_check
      _
    $region7: #{tpu_custom_call.1} parent=1 // pred_check_branch
      %26 = sbr.rel (0) target = $region9
    $region8: #{tpu_custom_call.1} parent=1 // pred_region
      %s28 = ssub.s32 128, 128
      %29 = vsyncadd [#allocation6], %s28
      %s30 = sshll.u32 [#allocation5], 4
      %s31 = int_to_ptr.vmem [resolvable:$true] %s30
      %36 = dma.hbm_to_vmem [thread:$0]  %s1, 128, %s31, [#allocation6], 64, 64, 4
    $region9: #{tpu_custom_call.1} parent=1 // pred_fallthru
      _
    // Predicated region
    $region10: #{tpu_custom_call.1} parent=1 // pred_check
      _
    $region11: #{tpu_custom_call.1} parent=1 // pred_check_branch
      %38 = sbr.rel (0) target = $region13
    $region12: #{tpu_custom_call.1} parent=1 // pred_region
      _
    $region13: #{tpu_custom_call.1} parent=1 // pred_fallthru
      _
    // Predicated region
    $region14: #{tpu_custom_call.1} parent=1 // pred_check
      _
    $region15: #{tpu_custom_call.1} parent=1 // pred_check_branch
      %40 = sbr.rel (0) target = $region17
    $region16: #{tpu_custom_call.1} parent=1 // pred_region
      %s42 = ssub.s32 256, 256
      %43 = vsyncadd [#allocation6], %s42
      %s44 = sshll.u32 [#allocation7], 4
      %s45 = int_to_ptr.vmem [resolvable:$true] %s44
      %50 = dma.hbm_to_vmem [thread:$0]  %s3, 256, %s45, [#allocation6], 64, 64, 4
    $region17: #{tpu_custom_call.1} parent=1 // pred_fallthru
      _
    // Predicated region
    $region18: #{tpu_custom_call.1} parent=1 // pred_check
      _
    $region19: #{tpu_custom_call.1} parent=1 // pred_check_branch
      %52 = sbr.rel (0) target = $region21
    $region20: #{tpu_custom_call.1} parent=1 // pred_region
      _
    $region21: #{tpu_custom_call.1} parent=1 // pred_fallthru
      _
    // Predicated region
    $region22: #{tpu_custom_call.1} parent=1 // pred_check
      _
    $region23: #{tpu_custom_call.1} parent=1 // pred_check_branch
      %54 = sbr.rel (0) target = $region25
    $region24: #{tpu_custom_call.1} parent=1 // pred_region
      %55 = dma.done [#allocation3], 128
    $region25: #{tpu_custom_call.1} parent=1 // pred_fallthru
      _
    // Predicated region
    $region26: #{tpu_custom_call.1} parent=1 // pred_check
      _
    $region27: #{tpu_custom_call.1} parent=1 // pred_check_branch
      %57 = sbr.rel (0) target = $region29
    $region28: #{tpu_custom_call.1} parent=1 // pred_region
      %58 = dma.done [#allocation6], 128
    $region29: #{tpu_custom_call.1} parent=1 // pred_fallthru
      _
    // Predicated region
    $region30: #{tpu_custom_call.1} parent=1 // pred_check
      _
    $region31: #{tpu_custom_call.1} parent=1 // pred_check_branch
      %60 = sbr.rel (0) target = $region33
    $region32: #{tpu_custom_call.1} parent=1 // pred_region
      %61 = dma.done [#allocation6], 256
    $region33: #{tpu_custom_call.1} parent=1 // pred_fallthru
      _
    %v63 = vld [vmem:[#allocation2] sm:$0xf]
    %v64 = vld [vmem:[#allocation2 + $0x4] sm:$0xf]
    %v65 = vld [vmem:[#allocation5] sm:$0xf]
    %v66 = vld [vmem:[#allocation5 + $0x4] sm:$0xf]
    %v67 = vld [vmem:[%s2] sm:$0x1]
    %v69 = vlaneseq
    %v70 = vshrl.u32 %v69, 7
    %v71 = vsub.s32 0, %v70
    %v72 = vrot.slane %v67, %v71
    %v76 = vunpack.c.l.b16 %v63
    %v77 = vunpack.c.l.b16 %v64
    %v78 = vpack.c.b16 %v77, %v76
    %v81 = vunpack.c.l.b16 %v65
    %v82 = vunpack.c.l.b16 %v66
    %v83 = vpack.c.b16 %v82, %v81
    %vm85 = vcmask 130048
    %v87 = vsel %vm85, %v78, 0
    %89 = vmatprep.subr.bf16.mxu0 0
    %90 = vmatpush1.bf16.msra.mxu0 0
    %91 = vmatprep.subr.bf16.mxu0 0
    %92 = vmatpush1.bf16.msra.mxu0 0
    %93 = vmatprep.subr.bf16.mxu0 0
    %94 = vmatpush1.bf16.msra.mxu0 0
    %95 = vmatprep.subr.bf16.mxu0 0
    %96 = vmatpush1.bf16.msra.mxu0 0
    %97 = vmatprep.subr.bf16.mxu0 0
    %98 = vmatpush1.bf16.msra.mxu0 0
    %99 = vmatprep.subr.bf16.mxu0 0
    %100 = vmatpush1.bf16.msra.mxu0 0
    %101 = vmatprep.subr.bf16.mxu0 0
    %102 = vmatpush1.bf16.msra.mxu0 0
    %103 = vmatprep.subr.bf16.mxu0 0
    %104 = vmatpush1.bf16.msra.mxu0 %v83
    %105 = vmatprep.subr.bf16.mxu0 0
    %106 = vmatpush2.bf16.msra.mxu0 0
    %107 = vmatprep.subr.bf16.mxu0 0
    %108 = vmatpush2.bf16.msra.mxu0 0
    %109 = vmatprep.subr.bf16.mxu0 0
    %110 = vmatpush2.bf16.msra.mxu0 0
    %111 = vmatprep.subr.bf16.mxu0 0
    %112 = vmatpush2.bf16.msra.mxu0 0
    %113 = vmatprep.subr.bf16.mxu0 0
    %114 = vmatpush2.bf16.msra.mxu0 0
    %115 = vmatprep.subr.bf16.mxu0 0
    %116 = vmatpush2.bf16.msra.mxu0 0
    %117 = vmatprep.subr.bf16.mxu0 0
    %118 = vmatpush2.bf16.msra.mxu0 0
    %119 = vmatprep.subr.bf16.mxu0 0
    %120 = vmatpush2.bf16.msra.mxu0 0
    %121 = vmatprep.mubr.bf16.mxu0 0
    %122 = vmatmul.mubr.bf16.gmra.mxu0 %v87
    %v123 = vpop.f32.mrf.mxu0
    %v124 = vadd.f32 %v72, %v123
    %v125 = vpop.f32.mrf.mxu0
    %v126 = vpop.f32.mrf.mxu0
    %v127 = vadd.f32 %v72, %v126
    %v128 = vpop.f32.mrf.mxu0
    %129 = vdwg.mxu0
    %v130 = vmax.f32 %v124, 0.0
    %v131 = vmax.f32 %v127, 0.0
    %v132 = vpack.c.bf16 %v131, %v130
    %v133 = vld [vmem:[#allocation7] sm:$0xf]
    %v134 = vld [vmem:[#allocation7 + $0x4] sm:$0xf]
    %v135 = vld [vmem:[#allocation7 + $0x8] sm:$0xf]
    %v136 = vld [vmem:[#allocation7 + $0xc] sm:$0xf]
    %v137 = vld [vmem:[%s4] sm:$0x1]
    %v139 = vlaneseq
    %v140 = vshrl.u32 %v139, 7
    %v141 = vsub.s32 0, %v140
    %v142 = vrot.slane %v137, %v141
    %v148 = vunpack.c.l.b16 %v133
    %v149 = vunpack.c.l.b16 %v134
    %v150 = vunpack.c.l.b16 %v135
    %v151 = vunpack.c.l.b16 %v136
    %v152 = vpack.c.b16 %v149, %v148
    %v153 = vpack.c.b16 %v151, %v150
    %vm156 = vcmask 261120
    %v158 = vsel %vm156, %v132, 0
    %160 = vmatprep.subr.bf16.mxu0 0
    %161 = vmatpush1.bf16.msra.mxu0 0
    %162 = vmatprep.subr.bf16.mxu0 0
    %163 = vmatpush1.bf16.msra.mxu0 0
    %164 = vmatprep.subr.bf16.mxu0 0
    %165 = vmatpush1.bf16.msra.mxu0 0
    %166 = vmatprep.subr.bf16.mxu0 0
    %167 = vmatpush1.bf16.msra.mxu0 0
    %168 = vmatprep.subr.bf16.mxu0 0
    %169 = vmatpush1.bf16.msra.mxu0 0
    %170 = vmatprep.subr.bf16.mxu0 0
    %171 = vmatpush1.bf16.msra.mxu0 0
    %172 = vmatprep.subr.bf16.mxu0 0
    %173 = vmatpush1.bf16.msra.mxu0 %v153
    %174 = vmatprep.subr.bf16.mxu0 0
    %175 = vmatpush1.bf16.msra.mxu0 %v152
    %176 = vmatprep.subr.bf16.mxu0 0
    %177 = vmatpush2.bf16.msra.mxu0 0
    %178 = vmatprep.subr.bf16.mxu0 0
    %179 = vmatpush2.bf16.msra.mxu0 0
    %180 = vmatprep.subr.bf16.mxu0 0
    %181 = vmatpush2.bf16.msra.mxu0 0
    %182 = vmatprep.subr.bf16.mxu0 0
    %183 = vmatpush2.bf16.msra.mxu0 0
    %184 = vmatprep.subr.bf16.mxu0 0
    %185 = vmatpush2.bf16.msra.mxu0 0
    %186 = vmatprep.subr.bf16.mxu0 0
    %187 = vmatpush2.bf16.msra.mxu0 0
    %188 = vmatprep.subr.bf16.mxu0 0
    %189 = vmatpush2.bf16.msra.mxu0 0
    %190 = vmatprep.subr.bf16.mxu0 0
    %191 = vmatpush2.bf16.msra.mxu0 0
    %192 = vmatprep.mubr.bf16.mxu0 0
    %193 = vmatmul.mubr.bf16.gmra.mxu0 %v158
    %v194 = vpop.f32.mrf.mxu0
    %v195 = vadd.f32 %v142, %v194
    %v196 = vpop.f32.mrf.mxu0
    %v197 = vpop.f32.mrf.mxu0
    %v198 = vadd.f32 %v142, %v197
    %v199 = vpop.f32.mrf.mxu0
    %200 = vdwg.mxu0
    %201 = vmax.xlane.f32.xlu0 %v195
    %v202 = vpop.xlane.xlu0 %201
    %203 = vmax.xlane.f32.xlu0 %v198
    %v204 = vpop.xlane.xlu0 %203
    %v205 = vsub.f32 %v195, %v202
    %v206 = vsub.f32 %v198, %v204
    %v207 = vmul.f32 %v205, 1.442695
    %v208 = vpow.pop %v207
    %v209 = vmul.f32 %v206, 1.442695
    %v210 = vpow.pop %v209
    %211 = vadd.xlane.f32.xlu0 %v208
    %v212 = vpop.xlane.xlu0 %211
    %213 = vadd.xlane.f32.xlu0 %v210
    %v214 = vpop.xlane.xlu0 %213
    %v215 = vrcp.pop %v212
    %v216 = vrcp.pop %v214
    %v217 = vmul.f32 %v208, %v215
    %v218 = vmul.f32 %v210, %v216
    %219 = vst [vmem:[#allocation8] sm:$0xff] %v217
    %220 = vst [vmem:[#allocation8 + $0x8] sm:$0xff] %v218
    // Predicated region
    $region34: #{tpu_custom_call.1} parent=1 // pred_check
      _
    $region35: #{tpu_custom_call.1} parent=1 // pred_check_branch
      %222 = sbr.rel (0) target = $region37
    $region36: #{tpu_custom_call.1} parent=1 // pred_region
      %s224 = ssub.s32 256, 256
      %225 = vsyncadd [#allocation4], %s224
      %s226 = sshll.u32 [#allocation8], 4
      %s227 = int_to_ptr.vmem [resolvable:$true] %s226
      %232 = dma.vmem_to_hbm [thread:$0]  %s227, 256, %s5, [#allocation4], 128, 128, 8
    $region37: #{tpu_custom_call.1} parent=1 // pred_fallthru
      _
    // Predicated region
    $region38: #{tpu_custom_call.1} parent=1 // pred_check
      _
    $region39: #{tpu_custom_call.1} parent=1 // pred_check_branch
      %234 = sbr.rel (0) target = $region41
    $region40: #{tpu_custom_call.1} parent=1 // pred_region
      %235 = dma.done [#allocation4], 256
    $region41: #{tpu_custom_call.1} parent=1 // pred_fallthru
      _
    %236 = vsyncpa [#allocation3], 1
    %237 = vsyncpa [#allocation6], 1
    %238 = vsyncpa [#allocation4], 1

</llo_original>
